<compile_context>
chip_gen: v5e
topology: v5e:2x2
jax: 0.10.0
libtpu: 0.0.40
codegen_flags: <defaults>
</compile_context>

<pallas_src>
import math
import functools

import jax
import jax.numpy as jnp
from jax.experimental import pallas as pl
from jax.experimental.pallas import tpu as pltpu


def _cross_attn_kernel(*refs, use_freq, fusion_weight, fuse_cat, compute_dtype):
    """One grid step: block_b batch elements, full (N, D) tiles in VMEM."""
    if use_freq:
        rgb_ref, freq_ref, wq_ref, wk_ref, out_ref = refs
        ifreq_ref = wv_ref = None
    else:
        rgb_ref, freq_ref, ifreq_ref, wq_ref, wk_ref, wv_ref, out_ref = refs

    bt, n, d = rgb_ref.shape
    inner = wq_ref.shape[1]
    mm = compute_dtype

    rgb = rgb_ref[...]                                     # (Bt, N, D) f32
    freq = freq_ref[...]                                   # (Bt, N, D) f32

    # scale_dot's 1/sqrt(E) is folded into Wq: D*inner VPU multiplies instead
    # of Bt*N*inner on q.
    scale = 1.0 / math.sqrt(inner)
    wq = (wq_ref[...] * scale).astype(mm)                  # (D, inner)
    wk = wk_ref[...].astype(mm)

    # Flattened q/k projections: one (Bt*N, D) @ (D, inner) MXU matmul each,
    # f32 accumulation.  The collapse/expand reshapes are tile-aligned (and
    # hence copy-free) when N is a multiple of 8.
    q = jnp.dot(rgb.reshape(bt * n, d).astype(mm), wq,
                preferred_element_type=jnp.float32).reshape(bt, n, inner)
    k = jnp.dot(freq.reshape(bt * n, d).astype(mm), wk,
                preferred_element_type=jnp.float32).reshape(bt, n, inner)

    # scores = (q / sqrt(E)) @ k^T -- contraction on the last dims, no
    # materialized transpose.
    # NOTE: the (N, N) scores/p block is the VMEM-limiting term; switch to
    # key-axis tiling + online softmax from roughly N >= 1024-1536 on v7x
    # (64 MiB VMEM) and N >= ~2k on v5e/v6e.
    scores = jnp.einsum("bqe,bke->bqk", q.astype(mm), k.astype(mm),
                        preferred_element_type=jnp.float32)   # (Bt, N, N) f32

    m = jnp.max(scores, axis=-1, keepdims=True)
    p = jnp.exp(scores - m)                                   # unnormalized f32
    l = jnp.sum(p, axis=-1, keepdims=True)                    # (Bt, N, 1) f32

    if use_freq:
        # attn_out = softmax(scores) @ freq (the v projection is dead here).
        pv = jnp.einsum("bqk,bkd->bqd", p.astype(mm), freq.astype(mm),
                        preferred_element_type=jnp.float32)
    else:
        v = jnp.dot(ifreq_ref[...].reshape(bt * n, d).astype(mm),
                    wv_ref[...].astype(mm),
                    preferred_element_type=jnp.float32).reshape(bt, n, inner)
        pv = jnp.einsum("bqk,bke->bqe", p.astype(mm), v.astype(mm),
                        preferred_element_type=jnp.float32)

    # Normalize AFTER the PV matmul; fold fusion_weight into the (Bt, N, 1)
    # approx reciprocal column (EUP slot) instead of a full-slab multiply.
    attn_out = pv * (pl.reciprocal(l, approx=True) * fusion_weight)

    if fuse_cat:
        # Fused 'cat': single lane-dense store of [rgb | weight*attn_out].
        out_ref[...] = jnp.concatenate([rgb, attn_out],
                                       axis=-1).astype(out_ref.dtype)
    else:
        # Fused 'add'.
        out_ref[...] = (rgb + attn_out).astype(out_ref.dtype)


def _tpu_policy():
    """Return (vmem_limit_bytes, two_tensorcores, prefer_128_rows) per chip."""
    kind = ""
    try:
        kind = jax.devices()[0].device_kind.lower()
    except Exception:
        pass
    vmem_phys = None
    try:
        vmem_phys = int(getattr(pltpu.get_tpu_info(),
                                "vmem_capacity_bytes", 0)) or None
    except Exception:
        pass
    two_tc = "v7" in kind                     # v7x: 2 TCs / chip, 64 MiB VMEM/TC
    if vmem_phys is None:
        if two_tc:
            vmem_phys = 64 * 1024 * 1024
        elif "v2" in kind or "v3" in kind:
            vmem_phys = 16 * 1024 * 1024
        else:
            vmem_phys = 128 * 1024 * 1024     # v4 / v5e / v5p / v6e
    cap = (48 if two_tc else 100) * 1024 * 1024
    vmem_limit = min(cap, (vmem_phys * 3) // 4)
    prefer_128 = ("v5" in kind) and ("v5p" not in kind)   # v5e MXU is 128-wide
    return vmem_limit, two_tc, prefer_128


def _pick_block_b(B, N, D, inner, d_attn, d_out, n_tok_inputs,
                  compute_dtype, vmem_limit, two_tc, prefer_128):
    """Largest divisor of B whose per-step working set fits the VMEM budget.

    Keeps >= 2 grid steps only on 2-TC chips (v7x) so both cores get work; on
    single-TC chips the grid is a serial loop, so bigger blocks just amortize
    the ~0.35 us per-step overhead and fill MXU rows (cap 1024 rows; v5e
    prefers multiples of 128 for its 128-wide MXU).
    """
    cbytes = jnp.dtype(compute_dtype).itemsize
    per_b = (
        2 * n_tok_inputs * N * D * 4          # double-buffered input tiles
        + 2 * N * d_out * 4                   # double-buffered output tile
        + 2 * N * D * cbytes                  # rgb/freq compute-dtype casts
        + 2 * N * inner * (4 + cbytes)        # q, k (f32 + compute dtype)
        + N * N * (8 + cbytes)                # scores, p (f32) + p cast
        + 2 * N * d_attn * 4                  # pv accumulator + attn_out
    )
    n_w = 2 if n_tok_inputs == 2 else 3
    fixed = 2 * n_w * D * inner * 4 + (2 << 20)   # weights (x2 bufs) + slack
    budget = (vmem_limit * 7) // 10 - fixed
    max_rows = 1024

    cands = []
    for c in range(1, B + 1):
        if B % c:
            continue
        if c > 1 and (c * N > max_rows or c * per_b > budget):
            continue
        if two_tc and B >= 2 and B // c < 2:
            continue
        cands.append(c)
    if not cands:
        return 1
    if prefer_128:
        aligned = [c for c in cands if (c * N) % 128 == 0]
        if aligned:
            return max(aligned)
    return max(cands)


def cross_attention_pallas(rgb, freq, ifreq, wq_t, wk_t, wv_t,
                           version="ca-fcat-0.5", block_b=None,
                           compute_dtype=jnp.bfloat16):
    """rgb/freq/ifreq: (B, N, D); w*_t: (D, inner) pre-transposed nn.Linear
    weights (PyTorch computes x @ W.T).

    compute_dtype sets the MXU operand dtype (bf16 default: ~2x MXU throughput
    on v5e/v6e/v7x); accumulation and softmax math stay in f32.
    """
    B, N, D = rgb.shape
    inner_dim = wq_t.shape[1]
    use_freq = version.split("-")[1][0] == "f"
    fusion_weight = float(version.split("-")[-1])
    fuse_cat = "cat" in version
    if not fuse_cat and "add" not in version:
        raise ValueError(version)
    d_attn = D if use_freq else inner_dim
    if not fuse_cat:
        assert d_attn == D, "'add' fusion requires attn width == in_dim"
    d_out = D + d_attn if fuse_cat else D
    # TODO(synk): if N is not a multiple of 8 the in-kernel (Bt*N, D) flatten
    # reshapes may materialize VMEM copies; pad N (+ score masking) upstream
    # for such shapes.
    # TODO(synk): prj_out=True (Linear + Dropout(p=0.1)) and `activation` are
    # not wired; the module defaults (Identity / None) are what is implemented.

    vmem_limit, two_tc, prefer_128 = _tpu_policy()
    n_tok_inputs = 2 if use_freq else 3
    if block_b is None:
        block_b = _pick_block_b(B, N, D, inner_dim, d_attn, d_out,
                                n_tok_inputs, compute_dtype,
                                vmem_limit, two_tc, prefer_128)
    assert B % block_b == 0, (B, block_b)

    kernel = functools.partial(
        _cross_attn_kernel,
        use_freq=use_freq,
        fusion_weight=fusion_weight,
        fuse_cat=fuse_cat,
        compute_dtype=compute_dtype,
    )

    tok_spec = pl.BlockSpec((block_b, N, D), lambda b: (b, 0, 0))
    # Weight blocks are grid-invariant; the extra pipeline buffer is negligible
    # at these D/inner sizes (could be single-buffered for very large weights).
    w_spec = pl.BlockSpec((D, inner_dim), lambda b: (0, 0))

    if use_freq:
        in_specs = [tok_spec, tok_spec, w_spec, w_spec]
        args = (rgb, freq, wq_t, wk_t)        # ifreq / Wv are dead: skip DMA
    else:
        in_specs = [tok_spec, tok_spec, tok_spec, w_spec, w_spec, w_spec]
        args = (rgb, freq, ifreq, wq_t, wk_t, wv_t)

    return pl.pallas_call(
        kernel,
        out_shape=jax.ShapeDtypeStruct((B, N, d_out), rgb.dtype),
        grid_spec=pl.GridSpec(
            grid=(B // block_b,),
            in_specs=in_specs,
            out_specs=pl.BlockSpec((block_b, N, d_out), lambda b: (b, 0, 0)),
        ),
        compiler_params=pltpu.CompilerParams(
            dimension_semantics=("parallel",),
            vmem_limit_bytes=vmem_limit,
        ),
    )(*args)


def cross_attention_ref(rgb, freq, ifreq, wq_t, wk_t, wv_t,
                        version="ca-fcat-0.5"):
    """Pure-JAX reference mirroring the PyTorch module (f32)."""
    inner_dim = wq_t.shape[1]
    use_freq = version.split("-")[1][0] == "f"
    w = float(version.split("-")[-1])
    q = rgb @ wq_t
    k = freq @ wk_t
    v = ifreq @ wv_t
    q = q / math.sqrt(inner_dim)
    attn = jax.nn.softmax(jnp.einsum("bnd,bmd->bnm", q, k), axis=-1)
    attn_out = jnp.einsum("bnm,bmd->bnd", attn, freq if use_freq else v)
    if "cat" in version:
        return jnp.concatenate([rgb, w * attn_out], axis=2)
    return rgb + w * attn_out


if __name__ == "__main__":
    B, N, D = 2, 8, 32          # batch, tokens, in_dim (inner_dim = in_dim)
    key = jax.random.PRNGKey(0)
    k_rgb, k_freq, k_ifreq, k_wq, k_wk, k_wv = jax.random.split(key, 6)

    rgb = jax.random.normal(k_rgb, (B, N, D), dtype=jnp.float32)
    freq = jax.random.normal(k_freq, (B, N, D), dtype=jnp.float32)
    ifreq = jax.random.normal(k_ifreq, (B, N, D), dtype=jnp.float32)

    # nn.Linear(in_dim, inner_dim, bias=False) weight is (inner, in); we store
    # its transpose (in, inner), deterministically initialized.
    bound = 1.0 / math.sqrt(D)
    wq_t = jax.random.uniform(k_wq, (D, D), jnp.float32, -bound, bound)
    wk_t = jax.random.uniform(k_wk, (D, D), jnp.float32, -bound, bound)
    wv_t = jax.random.uniform(k_wv, (D, D), jnp.float32, -bound, bound)

    ref = cross_attention_ref(rgb, freq, ifreq, wq_t, wk_t, wv_t)

    # f32-operand path: tight check (only the approx-reciprocal error remains).
    out_f32 = jax.block_until_ready(
        cross_attention_pallas(rgb, freq, ifreq, wq_t, wk_t, wv_t,
                               compute_dtype=jnp.float32))
    assert out_f32.shape == (B, N, 2 * D), out_f32.shape
    assert jnp.allclose(out_f32, ref, atol=1e-2, rtol=1e-2), "f32 mismatch"

    # Default bf16-MXU path: looser tolerance vs. the f32 reference.
    out_bf16 = jax.block_until_ready(
        cross_attention_pallas(rgb, freq, ifreq, wq_t, wk_t, wv_t))
    assert out_bf16.shape == (B, N, 2 * D), out_bf16.shape
    assert jnp.allclose(out_bf16, ref, atol=5e-2, rtol=5e-2), "bf16 mismatch"

    print("KERNEL_OK")
</pallas_src>

<mosaic_0001>
module attributes {stable_mosaic.version = 11 : i64} {
  func.func @_cross_attn_kernel(%arg0: i32, %arg1: memref<2x8x32xf32, #tpu.memory_space<vmem>>, %arg2: memref<2x8x32xf32, #tpu.memory_space<vmem>>, %arg3: memref<32x32xf32, #tpu.memory_space<vmem>>, %arg4: memref<32x32xf32, #tpu.memory_space<vmem>>, %arg5: memref<2x8x64xf32, #tpu.memory_space<vmem>>) attributes {dimension_semantics = [#tpu.dimension_semantics<parallel>], iteration_bounds = array<i64: 1>, scalar_prefetch = 0 : i64, scratch_operands = 0 : i64, tpu.core_type = #tpu.core_type<tc>, window_params = [{transform_indices = @transform_0, window_bounds = array<i64: 2, 8, 32>}, {transform_indices = @transform_1, window_bounds = array<i64: 2, 8, 32>}, {pipeline_mode = #tpu.pipeline_mode<synchronous>, transform_indices = @transform_2, window_bounds = array<i64: 32, 32>}, {pipeline_mode = #tpu.pipeline_mode<synchronous>, transform_indices = @transform_3, window_bounds = array<i64: 32, 32>}, {transform_indices = @transform_4, window_bounds = array<i64: 2, 8, 64>}]} {
    %c0 = arith.constant 0 : index
    %c0_0 = arith.constant 0 : index
    %c0_1 = arith.constant 0 : index
    %0 = vector.load %arg1[%c0, %c0_0, %c0_1] : memref<2x8x32xf32, #tpu.memory_space<vmem>>, vector<2x8x32xf32>
    %c0_2 = arith.constant 0 : index
    %c0_3 = arith.constant 0 : index
    %c0_4 = arith.constant 0 : index
    %1 = vector.load %arg2[%c0_2, %c0_3, %c0_4] : memref<2x8x32xf32, #tpu.memory_space<vmem>>, vector<2x8x32xf32>
    %c0_5 = arith.constant 0 : index
    %c0_6 = arith.constant 0 : index
    %2 = vector.load %arg3[%c0_5, %c0_6] : memref<32x32xf32, #tpu.memory_space<vmem>>, vector<32x32xf32>
    %cst = arith.constant 0.176776692 : f32
    %3 = vector.broadcast %cst : f32 to vector<32x32xf32>
    %4 = arith.mulf %2, %3 : vector<32x32xf32>
    %c0_7 = arith.constant 0 : index
    %c0_8 = arith.constant 0 : index
    %5 = vector.load %arg4[%c0_7, %c0_8] : memref<32x32xf32, #tpu.memory_space<vmem>>, vector<32x32xf32>
    %6 = vector.shape_cast %0 : vector<2x8x32xf32> to vector<16x32xf32>
    %cst_9 = arith.constant dense<0.000000e+00> : vector<16x32xf32>
    %7 = tpu.matmul %6, %4, %cst_9 {dimension_numbers = #tpu.dot_dimension_numbers<[1], [0], [0], [1], [0, 0, 1, 1], [], []>} : vector<16x32xf32>, vector<32x32xf32>, vector<16x32xf32> -> vector<16x32xf32>
    %8 = vector.shape_cast %7 : vector<16x32xf32> to vector<2x8x32xf32>
    %9 = vector.shape_cast %1 : vector<2x8x32xf32> to vector<16x32xf32>
    %cst_10 = arith.constant dense<0.000000e+00> : vector<16x32xf32>
    %10 = tpu.matmul %9, %5, %cst_10 {dimension_numbers = #tpu.dot_dimension_numbers<[1], [0], [0], [1], [0, 0, 1, 1], [], []>} : vector<16x32xf32>, vector<32x32xf32>, vector<16x32xf32> -> vector<16x32xf32>
    %11 = vector.shape_cast %10 : vector<16x32xf32> to vector<2x8x32xf32>
    "tpu.trace_start"() <{level = 10 : i32, message = "bqe,bke->bqk"}> : () -> ()
    %cst_11 = arith.constant dense<0.000000e+00> : vector<2x8x8xf32>
    %12 = tpu.matmul %8, %11, %cst_11 {dimension_numbers = #tpu.dot_dimension_numbers<[2], [2], [1], [1], [0, 0, 0, 1, 1, 1], [0], [0]>} : vector<2x8x32xf32>, vector<2x8x32xf32>, vector<2x8x8xf32> -> vector<2x8x8xf32>
    "tpu.trace_stop"() : () -> ()
    %cst_12 = arith.constant dense<0xFF800000> : vector<2x8xf32>
    %13 = vector.multi_reduction <maximumf>, %12, %cst_12 [2] : vector<2x8x8xf32> to vector<2x8xf32>
    %14 = vector.shape_cast %13 : vector<2x8xf32> to vector<2x8x1xf32>
    %15 = vector.broadcast %14 : vector<2x8x1xf32> to vector<2x8x8xf32>
    %16 = arith.subf %12, %15 : vector<2x8x8xf32>
    %17 = math.exp %16 : vector<2x8x8xf32>
    %cst_13 = arith.constant dense<0.000000e+00> : vector<2x8xf32>
    %18 = vector.multi_reduction <add>, %17, %cst_13 [2] : vector<2x8x8xf32> to vector<2x8xf32>
    %19 = vector.shape_cast %18 : vector<2x8xf32> to vector<2x8x1xf32>
    "tpu.trace_start"() <{level = 10 : i32, message = "bqk,bkd->bqd"}> : () -> ()
    %cst_14 = arith.constant dense<0.000000e+00> : vector<2x8x32xf32>
    %20 = tpu.matmul %17, %1, %cst_14 {dimension_numbers = #tpu.dot_dimension_numbers<[2], [1], [1], [2], [0, 0, 0, 1, 1, 2], [0], [0]>} : vector<2x8x8xf32>, vector<2x8x32xf32>, vector<2x8x32xf32> -> vector<2x8x32xf32>
    "tpu.trace_stop"() : () -> ()
    %21 = tpu.reciprocal %19 {approx = true} : vector<2x8x1xf32> -> vector<2x8x1xf32>
    %cst_15 = arith.constant 5.000000e-01 : f32
    %22 = vector.broadcast %cst_15 : f32 to vector<2x8x1xf32>
    %23 = arith.mulf %21, %22 : vector<2x8x1xf32>
    %24 = vector.broadcast %23 : vector<2x8x1xf32> to vector<2x8x32xf32>
    %25 = arith.mulf %20, %24 : vector<2x8x32xf32>
    %26 = tpu.concatenate %0, %25 in 2 : vector<2x8x32xf32>, vector<2x8x32xf32> -> vector<2x8x64xf32>
    %c0_16 = arith.constant 0 : index
    %c0_17 = arith.constant 0 : index
    %c0_18 = arith.constant 0 : index
    %27 = vector.load %arg5[%c0_16, %c0_17, %c0_18] : memref<2x8x64xf32, #tpu.memory_space<vmem>>, vector<2x8x64xf32>
    tpu.vector_store %arg5[%c0_16, %c0_17, %c0_18], %26 {strides = array<i32>} : memref<2x8x64xf32, #tpu.memory_space<vmem>>, vector<2x8x64xf32>,
    return
  }
  func.func @transform_0(%arg0: i32) -> (i32, i32, i32) {
    %c0_i32 = arith.constant 0 : i32
    %c0_i32_0 = arith.constant 0 : i32
    %c0_i32_1 = arith.constant 0 : i32
    return %arg0, %c0_i32, %c0_i32_0 : i32, i32, i32
  }
  func.func @transform_1(%arg0: i32) -> (i32, i32, i32) {
    %c0_i32 = arith.constant 0 : i32
    %c0_i32_0 = arith.constant 0 : i32
    %c0_i32_1 = arith.constant 0 : i32
    return %arg0, %c0_i32, %c0_i32_0 : i32, i32, i32
  }
  func.func @transform_2(%arg0: i32) -> (i32, i32) {
    %c0_i32 = arith.constant 0 : i32
    %c0_i32_0 = arith.constant 0 : i32
    %c0_i32_1 = arith.constant 0 : i32
    return %c0_i32, %c0_i32_0 : i32, i32
  }
  func.func @transform_3(%arg0: i32) -> (i32, i32) {
    %c0_i32 = arith.constant 0 : i32
    %c0_i32_0 = arith.constant 0 : i32
    %c0_i32_1 = arith.constant 0 : i32
    return %c0_i32, %c0_i32_0 : i32, i32
  }
  func.func @transform_4(%arg0: i32) -> (i32, i32, i32) {
    %c0_i32 = arith.constant 0 : i32
    %c0_i32_0 = arith.constant 0 : i32
    %c0_i32_1 = arith.constant 0 : i32
    return %arg0, %c0_i32, %c0_i32_0 : i32, i32, i32
  }
}

</mosaic_0001>

<llo_original>
// kernel: tpu_custom_call.1
$region0: #{tpu_custom_call.1}
  #allocation0 [shape = 'u32[]', space=smem, size = 0x4, offset = 0x4, fixed_abs, tag = 'smem constant byte address 0x4 - core index']
  #allocation1 [shape = 'u32[72,128]{1,0:T(1,128)}', space=vmem, size = 0x9000, scoped, tag = 'internal scratch']
  %s0 = inlined_call_operand.hbm [shape: f32[2,8,32], index: 0, kind: input, shape index: {}]
  %s1 = inlined_call_operand.hbm [shape: f32[2,8,32], index: 1, kind: input, shape index: {}]
  %s2 = inlined_call_operand.hbm [shape: f32[32,32], index: 2, kind: input, shape index: {}]
  %s3 = inlined_call_operand.hbm [shape: f32[32,32], index: 3, kind: input, shape index: {}]
  %s4 = inlined_call_operand.hbm [shape: f32[2,8,64], index: 4, kind: output, shape index: {}]
  %s5 = sld [smem:[#allocation0]]
  $region42: #{tpu_custom_call.1} parent=0
    _
  %s7 = ssub.s32 1, %s5
  %s8 = scalar_select 0, %s7, %s5
  $region1: #{tpu_custom_call.1} parent=0
    #allocation2 [shape = 'u8[8192]{0}', space=vmem, size = 0x2000, scoped, tag = 'input window, operand 0, single buffered']
    #allocation3 [shape = 's32[1]{0}', space=sflag, size = 0x4, scoped, tag = 'scoped memory for tpu_custom_call.1']
    #allocation4 [shape = 's32[1]{0}', space=sflag, size = 0x4, scoped, tag = 'scoped memory for tpu_custom_call.1']
    #allocation5 [shape = 'u8[8192]{0}', space=vmem, size = 0x2000, scoped, tag = 'input window, operand 1, single buffered']
    #allocation6 [shape = 's32[1]{0}', space=sflag, size = 0x4, scoped, tag = 'scoped memory for tpu_custom_call.1']
    #allocation7 [shape = 'u8[16384]{0}', space=vmem, size = 0x4000, scoped, tag = 'input window, operand 2, single buffered']
    #allocation8 [shape = 'u8[16384]{0}', space=vmem, size = 0x4000, scoped, tag = 'input window, operand 3, single buffered']
    #allocation9 [shape = 's32[1]{0}', space=sflag, size = 0x4, scoped, tag = 'scoped memory for tpu_custom_call.1']
    #allocation10 [shape = 'u8[8192]{0}', space=vmem, size = 0x2000, scoped, tag = 'output window, operand 0, single buffered']
    %9 = vsyncpa [#allocation3], 0
    %10 = vsyncpa [#allocation6], 0
    %11 = vsyncpa [#allocation9], 0
    %12 = vsyncpa [#allocation4], 0
    // Predicated region
    $region2: #{tpu_custom_call.1} parent=1 // pred_check
      _
    $region3: #{tpu_custom_call.1} parent=1 // pred_check_branch
      %14 = sbr.rel (0) target = $region5
    $region4: #{tpu_custom_call.1} parent=1 // pred_region
      %16 = vsyncadd [#allocation3], 0
      %s17 = sshll.u32 %s0, 4
      %s18 = int_to_ptr.hbm [resolvable:$true] %s17
      %s19 = sshll.u32 [#allocation2], 4
      %s20 = int_to_ptr.vmem [resolvable:$true] %s19
      %25 = dma.hbm_to_vmem [thread:$0]  %s18, 256, %s20, [#allocation3], 128, 128, 8
    $region5: #{tpu_custom_call.1} parent=1 // pred_fallthru
      _
    // Predicated region
    $region6: #{tpu_custom_call.1} parent=1 // pred_check
      _
    $region7: #{tpu_custom_call.1} parent=1 // pred_check_branch
      %27 = sbr.rel (0) target = $region9
    $region8: #{tpu_custom_call.1} parent=1 // pred_region
      %29 = vsyncadd [#allocation6], 0
      %s30 = sshll.u32 %s1, 4
      %s31 = int_to_ptr.hbm [resolvable:$true] %s30
      %s32 = sshll.u32 [#allocation5], 4
      %s33 = int_to_ptr.vmem [resolvable:$true] %s32
      %38 = dma.hbm_to_vmem [thread:$0]  %s31, 256, %s33, [#allocation6], 128, 128, 8
    $region9: #{tpu_custom_call.1} parent=1 // pred_fallthru
      _
    // Predicated region
    $region10: #{tpu_custom_call.1} parent=1 // pred_check
      _
    $region11: #{tpu_custom_call.1} parent=1 // pred_check_branch
      %40 = sbr.rel (0) target = $region13
    $region12: #{tpu_custom_call.1} parent=1 // pred_region
      %42 = vsyncadd [#allocation6], 0
      %s43 = sshll.u32 %s2, 4
      %s44 = int_to_ptr.hbm [resolvable:$true] %s43
      %s45 = sshll.u32 [#allocation7], 4
      %s46 = int_to_ptr.vmem [resolvable:$true] %s45
      %51 = dma.hbm_to_vmem [thread:$0]  %s44, 512, %s46, [#allocation6], 128, 128, 8
    $region13: #{tpu_custom_call.1} parent=1 // pred_fallthru
      _
    // Predicated region
    $region14: #{tpu_custom_call.1} parent=1 // pred_check
      _
    $region15: #{tpu_custom_call.1} parent=1 // pred_check_branch
      %53 = sbr.rel (0) target = $region17
    $region16: #{tpu_custom_call.1} parent=1 // pred_region
      %55 = vsyncadd [#allocation9], 0
      %s56 = sshll.u32 %s3, 4
      %s57 = int_to_ptr.hbm [resolvable:$true] %s56
      %s58 = sshll.u32 [#allocation8], 4
      %s59 = int_to_ptr.vmem [resolvable:$true] %s58
      %64 = dma.hbm_to_vmem [thread:$0]  %s57, 512, %s59, [#allocation9], 128, 128, 8
    $region17: #{tpu_custom_call.1} parent=1 // pred_fallthru
      _
    // Predicated region
    $region18: #{tpu_custom_call.1} parent=1 // pred_check
      _
    $region19: #{tpu_custom_call.1} parent=1 // pred_check_branch
      %66 = sbr.rel (0) target = $region21
    $region20: #{tpu_custom_call.1} parent=1 // pred_region
      %68 = dma.done [#allocation3], 256
    $region21: #{tpu_custom_call.1} parent=1 // pred_fallthru
      _
    // Predicated region
    $region22: #{tpu_custom_call.1} parent=1 // pred_check
      _
    $region23: #{tpu_custom_call.1} parent=1 // pred_check_branch
      %70 = sbr.rel (0) target = $region25
    $region24: #{tpu_custom_call.1} parent=1 // pred_region
      %72 = dma.done [#allocation6], 256
    $region25: #{tpu_custom_call.1} parent=1 // pred_fallthru
      _
    // Predicated region
    $region26: #{tpu_custom_call.1} parent=1 // pred_check
      _
    $region27: #{tpu_custom_call.1} parent=1 // pred_check_branch
      %74 = sbr.rel (0) target = $region29
    $region28: #{tpu_custom_call.1} parent=1 // pred_region
      %76 = dma.done [#allocation6], 512
    $region29: #{tpu_custom_call.1} parent=1 // pred_fallthru
      _
    // Predicated region
    $region30: #{tpu_custom_call.1} parent=1 // pred_check
      _
    $region31: #{tpu_custom_call.1} parent=1 // pred_check_branch
      %78 = sbr.rel (0) target = $region33
    $region32: #{tpu_custom_call.1} parent=1 // pred_region
      %80 = dma.done [#allocation9], 512
    $region33: #{tpu_custom_call.1} parent=1 // pred_fallthru
      _
    %v81 = vld [vmem:[#allocation2] sm:$0xff]
    %v82 = vld [vmem:[#allocation2 + $0x8] sm:$0xff]
    %v83 = vld [vmem:[#allocation5] sm:$0xff]
    %v84 = vld [vmem:[#allocation5 + $0x8] sm:$0xff]
    %v85 = vld [vmem:[#allocation7] sm:$0xff]
    %v86 = vld [vmem:[#allocation7 + $0x8] sm:$0xff]
    %v87 = vld [vmem:[#allocation7 + $0x10] sm:$0xff]
    %v88 = vld [vmem:[#allocation7 + $0x18] sm:$0xff]
    %v89 = vmul.f32 %v85, 0.17677669
    %v90 = vmul.f32 %v86, 0.17677669
    %v91 = vmul.f32 %v87, 0.17677669
    %v92 = vmul.f32 %v88, 0.17677669
    %v93 = vld [vmem:[#allocation8] sm:$0xff]
    %v94 = vld [vmem:[#allocation8 + $0x8] sm:$0xff]
    %v95 = vld [vmem:[#allocation8 + $0x10] sm:$0xff]
    %v96 = vld [vmem:[#allocation8 + $0x18] sm:$0xff]
    %vm97 = vcmask 261120
    %v99 = vsel %vm97, %v81, 0
    %v102 = vsel %vm97, %v82, 0
    %104 = vmatpush.msra.mxu0 0.0
    %105 = vmatpush.msra.mxu0 0.0
    %106 = vmatpush.msra.mxu0 0.0
    %107 = vmatpush.msra.mxu0 0.0
    %108 = vmatpush.msra.mxu0 0.0
    %109 = vmatpush.msra.mxu0 0.0
    %110 = vmatpush.msra.mxu0 0.0
    %111 = vmatpush.msra.mxu0 0.0
    %112 = vmatpush.msra.mxu0 0.0
    %113 = vmatpush.msra.mxu0 0.0
    %114 = vmatpush.msra.mxu0 0.0
    %115 = vmatpush.msra.mxu0 0.0
    %116 = vmatpush.msra.mxu0 %v92
    %117 = vmatpush.msra.mxu0 %v91
    %118 = vmatpush.msra.mxu0 %v90
    %119 = vmatpush.msra.mxu0 %v89
    %120 = vmatmul.f32.gmra.mxu0 %v99
    %v121 = vpop.f32.mrf.mxu0
    %v122 = vadd.f32 0.0, %v121
    %123 = vmatmul.f32.gmra.mxu0 %v102
    %v124 = vpop.f32.mrf.mxu0
    %v125 = vadd.f32 0.0, %v124
    %126 = vdwg.mxu0
    %v128 = vsel %vm97, %v83, 0
    %v131 = vsel %vm97, %v84, 0
    %133 = vmatpush.msra.mxu0 0.0
    %134 = vmatpush.msra.mxu0 0.0
    %135 = vmatpush.msra.mxu0 0.0
    %136 = vmatpush.msra.mxu0 0.0
    %137 = vmatpush.msra.mxu0 0.0
    %138 = vmatpush.msra.mxu0 0.0
    %139 = vmatpush.msra.mxu0 0.0
    %140 = vmatpush.msra.mxu0 0.0
    %141 = vmatpush.msra.mxu0 0.0
    %142 = vmatpush.msra.mxu0 0.0
    %143 = vmatpush.msra.mxu0 0.0
    %144 = vmatpush.msra.mxu0 0.0
    %145 = vmatpush.msra.mxu0 %v96
    %146 = vmatpush.msra.mxu0 %v95
    %147 = vmatpush.msra.mxu0 %v94
    %148 = vmatpush.msra.mxu0 %v93
    %149 = vmatmul.f32.gmra.mxu0 %v128
    %v150 = vpop.f32.mrf.mxu0
    %v151 = vadd.f32 0.0, %v150
    %152 = vmatmul.f32.gmra.mxu0 %v131
    %v153 = vpop.f32.mrf.mxu0
    %v154 = vadd.f32 0.0, %v153
    %155 = vdwg.mxu0
    %v157 = vsel %vm97, %v122, 0
    %v160 = vsel %vm97, %v151, 0
    %162 = vmatpush.xpose.msra.mxu0 0.0
    %163 = vmatpush.xpose.msra.mxu0 0.0
    %164 = vmatpush.xpose.msra.mxu0 0.0
    %165 = vmatpush.xpose.msra.mxu0 0.0
    %166 = vmatpush.xpose.msra.mxu0 0.0
    %167 = vmatpush.xpose.msra.mxu0 0.0
    %168 = vmatpush.xpose.msra.mxu0 0.0
    %169 = vmatpush.xpose.msra.mxu0 0.0
    %170 = vmatpush.xpose.msra.mxu0 0.0
    %171 = vmatpush.xpose.msra.mxu0 0.0
    %172 = vmatpush.xpose.msra.mxu0 0.0
    %173 = vmatpush.xpose.msra.mxu0 0.0
    %174 = vmatpush.xpose.msra.mxu0 0.0
    %175 = vmatpush.xpose.msra.mxu0 0.0
    %176 = vmatpush.xpose.msra.mxu0 0.0
    %177 = vmatpush.xpose.msra.mxu0 %v160
    %178 = vmatmul.f32.gmra.mxu0 %v157
    %v179 = vpop.f32.mrf.mxu0
    %v180 = vadd.f32 0.0, %v179
    %181 = vdwg.mxu0
    %v183 = vsel %vm97, %v125, 0
    %v186 = vsel %vm97, %v154, 0
    %188 = vmatpush.xpose.msra.mxu0 0.0
    %189 = vmatpush.xpose.msra.mxu0 0.0
    %190 = vmatpush.xpose.msra.mxu0 0.0
    %191 = vmatpush.xpose.msra.mxu0 0.0
    %192 = vmatpush.xpose.msra.mxu0 0.0
    %193 = vmatpush.xpose.msra.mxu0 0.0
    %194 = vmatpush.xpose.msra.mxu0 0.0
    %195 = vmatpush.xpose.msra.mxu0 0.0
    %196 = vmatpush.xpose.msra.mxu0 0.0
    %197 = vmatpush.xpose.msra.mxu0 0.0
    %198 = vmatpush.xpose.msra.mxu0 0.0
    %199 = vmatpush.xpose.msra.mxu0 0.0
    %200 = vmatpush.xpose.msra.mxu0 0.0
    %201 = vmatpush.xpose.msra.mxu0 0.0
    %202 = vmatpush.xpose.msra.mxu0 0.0
    %203 = vmatpush.xpose.msra.mxu0 %v186
    %204 = vmatmul.f32.gmra.mxu0 %v183
    %v205 = vpop.f32.mrf.mxu0
    %v206 = vadd.f32 0.0, %v205
    %207 = vdwg.mxu0
    %vm208 = vcmask 64512
    %v209 = vsel %vm208, %v180, -inf
    %210 = vmax.xlane.f32.xlu0 %v209
    %v211 = vpop.xlane.xlu0 %210
    %v212 = vsel %vm208, %v206, -inf
    %213 = vmax.xlane.f32.xlu0 %v212
    %v214 = vpop.xlane.xlu0 %213
    %v215 = vsub.f32 %v180, %v211
    %v216 = vsub.f32 %v206, %v214
    %v217 = vmul.f32 %v215, 1.442695
    %v218 = vpow.pop %v217
    %v219 = vmul.f32 %v216, 1.442695
    %v220 = vpow.pop %v219
    %v221 = vsel %vm208, %v218, 0.0
    %222 = vadd.xlane.f32.xlu0 %v221
    %v223 = vpop.xlane.xlu0 %222
    %v224 = vsel %vm208, %v220, 0.0
    %225 = vadd.xlane.f32.xlu0 %v224
    %v226 = vpop.xlane.xlu0 %225
    %v228 = vsel %vm208, %v218, 0
    %230 = vmatpush.msra.mxu0 0.0
    %231 = vmatpush.msra.mxu0 0.0
    %232 = vmatpush.msra.mxu0 0.0
    %233 = vmatpush.msra.mxu0 0.0
    %234 = vmatpush.msra.mxu0 0.0
    %235 = vmatpush.msra.mxu0 0.0
    %236 = vmatpush.msra.mxu0 0.0
    %237 = vmatpush.msra.mxu0 0.0
    %238 = vmatpush.msra.mxu0 0.0
    %239 = vmatpush.msra.mxu0 0.0
    %240 = vmatpush.msra.mxu0 0.0
    %241 = vmatpush.msra.mxu0 0.0
    %242 = vmatpush.msra.mxu0 0.0
    %243 = vmatpush.msra.mxu0 0.0
    %244 = vmatpush.msra.mxu0 0.0
    %245 = vmatpush.msra.mxu0 %v83
    %246 = vmatmul.f32.gmra.mxu0 %v228
    %v247 = vpop.f32.mrf.mxu0
    %v248 = vadd.f32 0.0, %v247
    %249 = vdwg.mxu0
    %v251 = vsel %vm208, %v220, 0
    %253 = vmatpush.msra.mxu0 0.0
    %254 = vmatpush.msra.mxu0 0.0
    %255 = vmatpush.msra.mxu0 0.0
    %256 = vmatpush.msra.mxu0 0.0
    %257 = vmatpush.msra.mxu0 0.0
    %258 = vmatpush.msra.mxu0 0.0
    %259 = vmatpush.msra.mxu0 0.0
    %260 = vmatpush.msra.mxu0 0.0
    %261 = vmatpush.msra.mxu0 0.0
    %262 = vmatpush.msra.mxu0 0.0
    %263 = vmatpush.msra.mxu0 0.0
    %264 = vmatpush.msra.mxu0 0.0
    %265 = vmatpush.msra.mxu0 0.0
    %266 = vmatpush.msra.mxu0 0.0
    %267 = vmatpush.msra.mxu0 0.0
    %268 = vmatpush.msra.mxu0 %v84
    %269 = vmatmul.f32.gmra.mxu0 %v251
    %v270 = vpop.f32.mrf.mxu0
    %v271 = vadd.f32 0.0, %v270
    %272 = vdwg.mxu0
    %v273 = vrcp.pop %v223
    %v274 = vrcp.pop %v226
    %v275 = vmul.f32 %v273, 0.5
    %v276 = vmul.f32 %v274, 0.5
    %v277 = vmul.f32 %v248, %v275
    %v278 = vmul.f32 %v271, %v276
    %281 = vrot.lane.b32.xlu0 %v277, 32
    %v282 = vpop.permute.xlu0 %281
    %283 = vrot.lane.b32.xlu0 %v278, 32
    %v284 = vpop.permute.xlu0 %283
    %v287 = vsel %vm97, %v81, %v282
    %v288 = vsel %vm97, %v82, %v284
    %vm289 = vcmask 523264
    %290 = vst.msk [vmem:[#allocation10] sm:$0xff] %vm289, %v287
    %291 = vst.msk [vmem:[#allocation10 + $0x8] sm:$0xff] %vm289, %v288
    // Predicated region
    $region34: #{tpu_custom_call.1} parent=1 // pred_check
      _
    $region35: #{tpu_custom_call.1} parent=1 // pred_check_branch
      %293 = sbr.rel (0) target = $region37
    $region36: #{tpu_custom_call.1} parent=1 // pred_region
      %295 = vsyncadd [#allocation4], 0
      %s296 = sshll.u32 [#allocation10], 4
      %s297 = int_to_ptr.vmem [resolvable:$true] %s296
      %s298 = sshll.u32 %s4, 4
      %s299 = int_to_ptr.hbm [resolvable:$true] %s298
      %304 = dma.vmem_to_hbm [thread:$0]  %s297, 256, %s299, [#allocation4], 128, 128, 8
    $region37: #{tpu_custom_call.1} parent=1 // pred_fallthru
      _
    // Predicated region
    $region38: #{tpu_custom_call.1} parent=1 // pred_check
      _
    $region39: #{tpu_custom_call.1} parent=1 // pred_check_branch
      %306 = sbr.rel (0) target = $region41
    $region40: #{tpu_custom_call.1} parent=1 // pred_region
      %308 = dma.done [#allocation4], 256
    $region41: #{tpu_custom_call.1} parent=1 // pred_fallthru
      _
    %309 = vsyncpa [#allocation3], 1
    %310 = vsyncpa [#allocation6], 1
    %311 = vsyncpa [#allocation9], 1
    %312 = vsyncpa [#allocation4], 1

</llo_original>
